<compile_context>
chip_gen: v6e
topology: v6e:2x2x1
jax: 0.10.0
libtpu: 0.0.40
codegen_flags: <defaults>
</compile_context>

<pallas_src>
import functools

import jax
import jax.numpy as jnp
from jax.experimental import pallas as pl
from jax.experimental.pallas import tpu as pltpu


def _expand_mask_kernel(x_ref, o_ref, *, padding, out_h, out_w):
    """x_ref: (1, out_h + 2p, out_w + 2p) f32 (zero-inserted + halo-padded).
    o_ref: (1, out_h, out_w) f32 in {0, 1}."""
    xp = x_ref[0]                       # (Hp, Wp)
    k = 2 * padding + 1

    # Separable box-sum: sum over rows first, then over columns.
    rows = xp[0:out_h, :]
    for di in range(1, k):
        rows = rows + xp[di:di + out_h, :]

    acc = rows[:, 0:out_w]
    for dj in range(1, k):
        acc = acc + rows[:, dj:dj + out_w]

    # Threshold in-kernel; bool cast happens in the wrapper (avoids i1 memref
    # outputs, which are not reliably supported by Mosaic).
    o_ref[0] = (acc > 0.5).astype(o_ref.dtype)


def expand_mask_forward(x, stride=1, padding=1):
    """Pallas implementation of ExpandMask.forward on an (N, 1, H, W) tensor.

    Returns a bool mask of shape (N, 1, H*stride, W*stride) (or (N,1,H,W) if
    stride == 1), matching the PyTorch module.
    """
    assert x.shape[1] == 1
    n, _, h, w = x.shape
    p = int(padding)
    s = int(stride)

    xf = x.astype(jnp.float32).reshape(n, h, w)

    if s > 1:
        ho, wo = h * s, w * s
        # conv_transpose2d with a one-hot (s x s) kernel == zero-insertion.
        up = jnp.zeros((n, ho, wo), jnp.float32).at[:, ::s, ::s].set(xf)
    else:
        ho, wo = h, w
        up = xf

    # Pre-pad the halo so the kernel needs no boundary handling.
    xpad = jnp.pad(up, ((0, 0), (p, p), (p, p)))
    hp, wp = ho + 2 * p, wo + 2 * p

    kernel = functools.partial(
        _expand_mask_kernel, padding=p, out_h=ho, out_w=wo)

    # TODO(synk): for very large spatial masks (>~1k x 1k) add row tiling with
    # halo blocks to keep per-step VMEM under the v7x/v5e scoped limits; for
    # typical channel==1 dynconv masks one spatial plane per grid step is tiny.
    out = pl.pallas_call(
        kernel,
        out_shape=jax.ShapeDtypeStruct((n, ho, wo), jnp.float32),
        grid_spec=pltpu.PrefetchScalarGridSpec(
            num_scalar_prefetch=0,
            grid=(n,),
            in_specs=[pl.BlockSpec((1, hp, wp), lambda b: (b, 0, 0))],
            out_specs=pl.BlockSpec((1, ho, wo), lambda b: (b, 0, 0)),
        ),
        compiler_params=pltpu.CompilerParams(
            dimension_semantics=("parallel",)),
    )(xpad)

    return out.reshape(n, 1, ho, wo).astype(jnp.bool_)


def _reference(x, stride, padding):
    """Pure-JAX reference (reduce_window box-sum) for verification."""
    n, _, h, w = x.shape
    xf = x.astype(jnp.float32).reshape(n, h, w)
    if stride > 1:
        up = jnp.zeros((n, h * stride, w * stride),
                       jnp.float32).at[:, ::stride, ::stride].set(xf)
    else:
        up = xf
    k = 2 * padding + 1
    ssum = jax.lax.reduce_window(
        up, 0.0, jax.lax.add,
        window_dimensions=(1, k, k),
        window_strides=(1, 1, 1),
        padding=((0, 0), (padding, padding), (padding, padding)))
    return (ssum > 0.5).reshape(n, 1, ssum.shape[1], ssum.shape[2])


if __name__ == "__main__":
    key = jax.random.PRNGKey(0)
    # Deterministic sparse 0/1 mask, (batch=2, channels=1, spatial=16x16).
    x = (jax.random.uniform(key, (2, 1, 16, 16)) > 0.7).astype(jnp.float32)

    # stride=2, padding=1 (the "expand by stride then dilate" path)
    y2 = expand_mask_forward(x, stride=2, padding=1)
    jax.block_until_ready(y2)
    ref2 = _reference(x, 2, 1)
    assert y2.shape == (2, 1, 32, 32) and y2.dtype == jnp.bool_
    assert bool(jnp.all(y2 == ref2))

    # stride=1, padding=1 (pure dilation path)
    y1 = expand_mask_forward(x, stride=1, padding=1)
    jax.block_until_ready(y1)
    ref1 = _reference(x, 1, 1)
    assert y1.shape == (2, 1, 16, 16) and y1.dtype == jnp.bool_
    assert bool(jnp.all(y1 == ref1))

    print("KERNEL_OK")
</pallas_src>

<mosaic_0001>
module attributes {stable_mosaic.version = 11 : i64} {
  func.func @_expand_mask_kernel(%arg0: i32, %arg1: memref<1x34x34xf32, #tpu.memory_space<vmem>>, %arg2: memref<1x32x32xf32, #tpu.memory_space<vmem>>) attributes {dimension_semantics = [#tpu.dimension_semantics<parallel>], iteration_bounds = array<i64: 2>, scalar_prefetch = 0 : i64, scratch_operands = 0 : i64, tpu.core_type = #tpu.core_type<tc>, window_params = [{transform_indices = @transform_0, window_bounds = array<i64: 1, 34, 34>}, {transform_indices = @transform_1, window_bounds = array<i64: 1, 32, 32>}]} {
    %c0 = arith.constant 0 : index
    %c0_0 = arith.constant 0 : index
    %c0_1 = arith.constant 0 : index
    %0 = vector.load %arg1[%c0, %c0_0, %c0_1] : memref<1x34x34xf32, #tpu.memory_space<vmem>>, vector<1x34x34xf32>
    %1 = vector.shape_cast %0 : vector<1x34x34xf32> to vector<34x34xf32>
    %2 = vector.extract_strided_slice %1 {offsets = [0, 0], sizes = [32, 34], strides = [1, 1]} : vector<34x34xf32> to vector<32x34xf32>
    %3 = vector.extract_strided_slice %1 {offsets = [1, 0], sizes = [32, 34], strides = [1, 1]} : vector<34x34xf32> to vector<32x34xf32>
    %4 = arith.addf %2, %3 : vector<32x34xf32>
    %5 = vector.extract_strided_slice %1 {offsets = [2, 0], sizes = [32, 34], strides = [1, 1]} : vector<34x34xf32> to vector<32x34xf32>
    %6 = arith.addf %4, %5 : vector<32x34xf32>
    %7 = vector.extract_strided_slice %6 {offsets = [0, 0], sizes = [32, 32], strides = [1, 1]} : vector<32x34xf32> to vector<32x32xf32>
    %8 = vector.extract_strided_slice %6 {offsets = [0, 1], sizes = [32, 32], strides = [1, 1]} : vector<32x34xf32> to vector<32x32xf32>
    %9 = arith.addf %7, %8 : vector<32x32xf32>
    %10 = vector.extract_strided_slice %6 {offsets = [0, 2], sizes = [32, 32], strides = [1, 1]} : vector<32x34xf32> to vector<32x32xf32>
    %11 = arith.addf %9, %10 : vector<32x32xf32>
    %cst = arith.constant 5.000000e-01 : f32
    %12 = vector.broadcast %cst : f32 to vector<32x32xf32>
    %13 = arith.cmpf ogt, %11, %12 : vector<32x32xf32>
    %14 = arith.extui %13 : vector<32x32xi1> to vector<32x32xi32>
    %15 = arith.sitofp %14 : vector<32x32xi32> to vector<32x32xf32>
    %c0_2 = arith.constant 0 : index
    %c0_3 = arith.constant 0 : index
    %c0_4 = arith.constant 0 : index
    %16 = vector.load %arg2[%c0_2, %c0_3, %c0_4] : memref<1x32x32xf32, #tpu.memory_space<vmem>>, vector<1x32x32xf32>
    %17 = vector.shape_cast %16 : vector<1x32x32xf32> to vector<32x32xf32>
    %18 = vector.shape_cast %15 : vector<32x32xf32> to vector<1x32x32xf32>
    tpu.vector_store %arg2[%c0_2, %c0_3, %c0_4], %18 {strides = array<i32>} : memref<1x32x32xf32, #tpu.memory_space<vmem>>, vector<1x32x32xf32>,
    return
  }
  func.func @transform_0(%arg0: i32) -> (i32, i32, i32) {
    %c0_i32 = arith.constant 0 : i32
    %c0_i32_0 = arith.constant 0 : i32
    %c0_i32_1 = arith.constant 0 : i32
    return %arg0, %c0_i32, %c0_i32_0 : i32, i32, i32
  }
  func.func @transform_1(%arg0: i32) -> (i32, i32, i32) {
    %c0_i32 = arith.constant 0 : i32
    %c0_i32_0 = arith.constant 0 : i32
    %c0_i32_1 = arith.constant 0 : i32
    return %arg0, %c0_i32, %c0_i32_0 : i32, i32, i32
  }
}

</mosaic_0001>

<llo_original>
// kernel: tpu_custom_call.1
$region0: #{tpu_custom_call.1}
  #allocation0 [shape = 'u32[]', space=smem, size = 0x4, offset = 0x4, fixed_abs, tag = 'smem constant byte address 0x4 - core index']
  #allocation1 [shape = 'u32[144,128]{1,0:T(1,128)}', space=vmem, size = 0x12000, scoped, tag = 'internal scratch']
  %s0 = inlined_call_operand.vmem [shape: f32[2,34,34], index: 0, kind: input, shape index: {}]
  %s1 = inlined_call_operand.hbm [shape: f32[2,32,32], index: 1, kind: output, shape index: {}]
  %s2 = sld [smem:[#allocation0]]
  $region37: #{tpu_custom_call.1} parent=0
    _
  %s4 = ssub.s32 1, %s2
  %s5 = scalar_select 0, %s4, %s2
  $region1: #{tpu_custom_call.1} parent=0
    #allocation2 [shape = 'u8[32768]{0}', space=vmem, size = 0x8000, scoped, tag = 'output window, operand 0']
    #allocation3 [shape = 's32[2]{0}', space=sflag, size = 0x8, scoped, tag = 'scoped memory for tpu_custom_call.1']
    %6 = vsyncpa [#allocation3], 0
    %s7 = scalar_lea.sflag [#allocation3], 1
    %8 = vsyncpa %s7, 0
    loop: start=0, step=1, limit=4
    $region2: #{tpu_custom_call.1} parent=1 // loop_pre_header
      _
    $region3: #{tpu_custom_call.1} parent=1 // loop_header
      %s10 = sphi 0, %s14
      %p11 = scmp.ge.s32.totalorder %s10, 4
      %s20 = sphi 0, %s22
      %s23 = sphi 0, %s20
      %s24 = sphi 0, %s23
      %s40 = sphi 0, %s24
      %s46 = sphi 0, %s48
      %s49 = sphi 0, %s46
      %s50 = sphi 0, %s49
      %s66 = sphi 0, %s50
    $region4: #{tpu_custom_call.1} parent=1 // loop_header_branch
      %13 = sbr.rel (%p11) target = $region8
    $region5: #{tpu_custom_call.1} parent=1 // loop_body
      %s15 = ssub.s32 %s10, 1
      %s16 = ssub.s32 %s10, 2
      %s17 = sadd.s32 %s10, 1
      %s18 = ssub.s32 %s10, %s17
      %p19 = scmp.eq.s32.totalorder %s18, 0
      %s21 = sadd.s32 %s20, 1
      %s22 = scalar_select %p19, %s20, %s21
      %p25 = pneg %p19
      %p26 = scmp.eq.s32.totalorder %s10, 1
      %p27 = por %p25, %p26
      %p28 = scmp.ne.s32.totalorder %s20, %s23
      %p29 = scmp.eq.s32.totalorder %s10, 0
      %p30 = por %p28, %p29
      %p31 = scmp.ne.s32.totalorder %s20, %s23
      %p32 = scmp.eq.s32.totalorder %s15, 1
      %p33 = por %p31, %p32
      %p34 = scmp.ne.s32.totalorder %s23, %s24
      %p35 = scmp.eq.s32.totalorder %s15, 0
      %p36 = por %p34, %p35
      %p37 = scmp.ne.s32.totalorder %s23, %s24
      %p38 = scmp.eq.s32.totalorder %s16, 1
      %p39 = por %p37, %p38
      %p41 = scmp.ne.s32.totalorder %s24, %s40
      %p42 = scmp.eq.s32.totalorder %s16, 0
      %p43 = por %p41, %p42
      %s44 = ssub.s32 %s10, %s17
      %p45 = scmp.eq.s32.totalorder %s44, 0
      %s47 = sadd.s32 %s46, 1
      %s48 = scalar_select %p45, %s46, %s47
      %p51 = pneg %p45
      %p52 = scmp.eq.s32.totalorder %s10, 1
      %p53 = por %p51, %p52
      %p54 = scmp.ne.s32.totalorder %s46, %s49
      %p55 = scmp.eq.s32.totalorder %s10, 0
      %p56 = por %p54, %p55
      %p57 = scmp.ne.s32.totalorder %s46, %s49
      %p58 = scmp.eq.s32.totalorder %s15, 1
      %p59 = por %p57, %p58
      %p60 = scmp.ne.s32.totalorder %s49, %s50
      %p61 = scmp.eq.s32.totalorder %s15, 0
      %p62 = por %p60, %p61
      %p63 = scmp.ne.s32.totalorder %s49, %s50
      %p64 = scmp.eq.s32.totalorder %s16, 1
      %p65 = por %p63, %p64
      %p67 = scmp.ne.s32.totalorder %s50, %s66
      %p68 = scmp.eq.s32.totalorder %s16, 0
      %p69 = por %p67, %p68
      %p70 = scmp.le.s32.totalorder 1, %s10
      %p71 = scmp.lt.s32.totalorder %s10, 3
      %p72 = pnand %p70, %p71
      %p73 = pneg %p72
      // Predicated region
      $region9: #{tpu_custom_call.1} parent=5 // pred_check
        _
      $region10: #{tpu_custom_call.1} parent=5 // pred_check_branch
        %75 = sbr.rel (%p72) target = $region12
      $region11: #{tpu_custom_call.1} parent=5 // pred_region
        %s76 = ssub.s32 %s10, 1
      $region12: #{tpu_custom_call.1} parent=5 // pred_fallthru
        _
      %p77 = scmp.lt.s32.totalorder %s10, 2
      // Predicated region
      $region13: #{tpu_custom_call.1} parent=5 // pred_check
        %p78 = pneg %p77
      $region14: #{tpu_custom_call.1} parent=5 // pred_check_branch
        %80 = sbr.rel (%p78) target = $region16
      $region15: #{tpu_custom_call.1} parent=5 // pred_region
        // Predicated region
        $region17: #{tpu_custom_call.1} parent=15 // pred_check
          %p81 = pneg %p30
        $region18: #{tpu_custom_call.1} parent=15 // pred_check_branch
          %83 = sbr.rel (%p81) target = $region20
        $region19: #{tpu_custom_call.1} parent=15 // pred_region
          %p84 = scmp.lt.s32.totalorder %s10, 1
          %s85 = scalar_select %p84, %s10, 1
          %s86 = smul.addr %s85, 5
          %s87 = smul.addr %s86, 8
          %s88 = scalar_lea.vmem %s0, %s87
        $region20: #{tpu_custom_call.1} parent=15 // pred_fallthru
          _
      $region16: #{tpu_custom_call.1} parent=5 // pred_fallthru
        _
      %p89 = scmp.le.s32.totalorder 1, %s10
      %p90 = scmp.lt.s32.totalorder %s10, 3
      %p91 = pnand %p89, %p90
      %p92 = pneg %p91
      // Predicated region
      $region21: #{tpu_custom_call.1} parent=5 // pred_check
        _
      $region22: #{tpu_custom_call.1} parent=5 // pred_check_branch
        %94 = sbr.rel (%p91) target = $region24
      $region23: #{tpu_custom_call.1} parent=5 // pred_region
        %s95 = ssub.s32 %s10, 1
        %p96 = scmp.lt.s32.totalorder %s15, 1
        %s97 = scalar_select %p96, %s15, 1
        %s98 = smul.addr %s97, 5
        %s99 = smul.addr %s98, 8
        %s100 = scalar_lea.vmem %s0, %s99
        %p101 = pneg %p36
        %p102 = pneg %p33
        %p103 = pneg %p62
        %p104 = pneg %p59
        %s105 = sand.u32 %s49, 1
        %s106 = scalar_lea.sflag [#allocation3], %s105
        %s107 = sand.u32 %s49, 1
        %s108 = smul.addr %s107, 32
        %s109 = scalar_lea.vmem [#allocation2], %s108
        %p110 = scmp.lt.s32.totalorder %s15, 1
        %s111 = scalar_select %p110, %s15, 1
        %s112 = smul.addr %s111, 5
        %s113 = smul.addr %s112, 8
        %s114 = scalar_lea.vmem %s0, %s113
        %v115 = vld [vmem:[%s114] sm:$0xff]
        %v116 = vld [vmem:[%s114 + $0x8] sm:$0xff]
        %v117 = vld [vmem:[%s114 + $0x10] sm:$0xff]
        %v118 = vld [vmem:[%s114 + $0x18] sm:$0xff]
        %v119 = vld [vmem:[%s114 + $0x20] sm:$0x3]
        %vm125 = vcmask 1046528
        %v126 = vrot.slane %v115, 1
        %v127 = vrot.slane %v116, 1
        %v128 = vsel %vm125, %v126, %v127
        %v129 = vrot.slane %v117, 1
        %v130 = vsel %vm125, %v127, %v129
        %v131 = vrot.slane %v118, 1
        %v132 = vsel %vm125, %v129, %v131
        %v133 = vrot.slane %v119, 1
        %v134 = vsel %vm125, %v131, %v133
        %v139 = vadd.f32 %v115, %v128
        %v140 = vadd.f32 %v116, %v130
        %v141 = vadd.f32 %v117, %v132
        %v142 = vadd.f32 %v118, %v134
        %vm143 = vcmask 1045504
        %v144 = vrot.slane %v115, 2
        %v145 = vrot.slane %v116, 2
        %v146 = vsel %vm143, %v144, %v145
        %v147 = vrot.slane %v117, 2
        %v148 = vsel %vm143, %v145, %v147
        %v149 = vrot.slane %v118, 2
        %v150 = vsel %vm143, %v147, %v149
        %v151 = vrot.slane %v119, 2
        %v152 = vsel %vm143, %v149, %v151
        %v157 = vadd.f32 %v139, %v146
        %v158 = vadd.f32 %v140, %v148
        %v159 = vadd.f32 %v141, %v150
        %v160 = vadd.f32 %v142, %v152
        %165 = vrot.lane.b32.xlu0 %v157, 127
        %v166 = vpop.permute.xlu0 %165
        %167 = vrot.lane.b32.xlu0 %v158, 127
        %v168 = vpop.permute.xlu0 %167
        %169 = vrot.lane.b32.xlu0 %v159, 127
        %v170 = vpop.permute.xlu0 %169
        %171 = vrot.lane.b32.xlu0 %v160, 127
        %v172 = vpop.permute.xlu0 %171
        %v177 = vadd.f32 %v157, %v166
        %v178 = vadd.f32 %v158, %v168
        %v179 = vadd.f32 %v159, %v170
        %v180 = vadd.f32 %v160, %v172
        %181 = vrot.lane.b32.xlu0 %v157, 126
        %v182 = vpop.permute.xlu0 %181
        %183 = vrot.lane.b32.xlu0 %v158, 126
        %v184 = vpop.permute.xlu0 %183
        %185 = vrot.lane.b32.xlu0 %v159, 126
        %v186 = vpop.permute.xlu0 %185
        %187 = vrot.lane.b32.xlu0 %v160, 126
        %v188 = vpop.permute.xlu0 %187
        %v193 = vadd.f32 %v177, %v182
        %v194 = vadd.f32 %v178, %v184
        %v195 = vadd.f32 %v179, %v186
        %v196 = vadd.f32 %v180, %v188
        %vm197 = vcmp.gt.f32.partialorder %v193, 0.5
        %vm198 = vcmp.gt.f32.partialorder %v194, 0.5
        %vm199 = vcmp.gt.f32.partialorder %v195, 0.5
        %vm200 = vcmp.gt.f32.partialorder %v196, 0.5
        %v201 = vsel %vm197, 1, 0
        %v202 = vsel %vm198, 1, 0
        %v203 = vsel %vm199, 1, 0
        %v204 = vsel %vm200, 1, 0
        %v205 = vcvt.s32.f32 %v201
        %v206 = vcvt.s32.f32 %v202
        %v207 = vcvt.s32.f32 %v203
        %v208 = vcvt.s32.f32 %v204
        %vm209 = vcmask 261120
        %210 = vst.msk [vmem:[%s109] sm:$0xff] %vm209, %v205
        %211 = vst.msk [vmem:[%s109 + $0x8] sm:$0xff] %vm209, %v206
        %212 = vst.msk [vmem:[%s109 + $0x10] sm:$0xff] %vm209, %v207
        %213 = vst.msk [vmem:[%s109 + $0x18] sm:$0xff] %vm209, %v208
        %s214 = sand.u32 %s49, 1
        %s215 = scalar_lea.sflag [#allocation3], %s214
        %s216 = sand.u32 %s49, 1
        %s217 = smul.addr %s216, 32
        %s218 = scalar_lea.vmem [#allocation2], %s217
        // Predicated region
        $region25: #{tpu_custom_call.1} parent=23 // pred_check
          %p219 = pneg %p59
        $region26: #{tpu_custom_call.1} parent=23 // pred_check_branch
          %221 = sbr.rel (%p219) target = $region28
        $region27: #{tpu_custom_call.1} parent=23 // pred_region
          %s223 = ssub.s32 512, 512
          %224 = vsyncadd %s215, %s223
          %s225 = smul.addr %s15, 4
          %s226 = smul.addr %s225, 128
          %s227 = scalar_lea.hbm %s1, %s226
          %s228 = sshll.u32 %s218, 4
          %s229 = int_to_ptr.vmem [resolvable:$true] %s228
          %234 = dma.vmem_to_hbm [thread:$0]  %s229, 512, %s227, %s215, 128, 128, 8
        $region28: #{tpu_custom_call.1} parent=23 // pred_fallthru
          _
      $region24: #{tpu_custom_call.1} parent=5 // pred_fallthru
        _
      %p235 = scmp.le.s32.totalorder 2, %s10
      // Predicated region
      $region29: #{tpu_custom_call.1} parent=5 // pred_check
        %p236 = pneg %p235
      $region30: #{tpu_custom_call.1} parent=5 // pred_check_branch
        %238 = sbr.rel (%p236) target = $region32
      $region31: #{tpu_custom_call.1} parent=5 // pred_region
        %s239 = ssub.s32 %s10, 2
        // Predicated region
        $region33: #{tpu_custom_call.1} parent=31 // pred_check
          %p240 = pneg %p65
        $region34: #{tpu_custom_call.1} parent=31 // pred_check_branch
          %242 = sbr.rel (%p240) target = $region36
        $region35: #{tpu_custom_call.1} parent=31 // pred_region
          %s243 = sand.u32 %s50, 1
          %s244 = scalar_lea.sflag [#allocation3], %s243
          %s245 = sand.u32 %s50, 1
          %s246 = smul.addr %s245, 32
          %s247 = scalar_lea.vmem [#allocation2], %s246
          %248 = dma.done %s244, 512
        $region36: #{tpu_custom_call.1} parent=31 // pred_fallthru
          _
      $region32: #{tpu_custom_call.1} parent=5 // pred_fallthru
        _
    $region6: #{tpu_custom_call.1} parent=1 // loop_footer
      %s14 = sadd.s32 1, %s10
    $region7: #{tpu_custom_call.1} parent=1 // loop_footer_branch
      %9 = sbr.rel target = $region3
    $region8: #{tpu_custom_call.1} parent=1 // loop_exit
      _
    %249 = vsyncpa [#allocation3], 1
    %s250 = scalar_lea.sflag [#allocation3], 1
    %251 = vsyncpa %s250, 1

</llo_original>
